<compile_context>
chip_gen: v6e
topology: v6e:2x2x1
jax: 0.10.0
libtpu: 0.0.40
codegen_flags: <defaults>
</compile_context>

<pallas_src>
import functools

import numpy as np
import jax
import jax.numpy as jnp
from jax.experimental import pallas as pl
from jax.experimental.pallas import tpu as pltpu


_TINY_BYTES = 64 * 1024  # below this a plain fused-XLA add beats kernel dispatch


# ---------------------------------------------------------------------------
# Kernels
# ---------------------------------------------------------------------------
def _add_kernel(y_ref, x_ref, o_ref):
    # Operands stay in their native dtypes in HBM; the (possible) cast + add is
    # VPU work hidden under the DMA of this memory-bound op.
    o_ref[...] = (y_ref[...] + x_ref[...]).astype(o_ref.dtype)


def _fused_kernel(fn, x_ref, o_ref):
    # fn traced inside the kernel: one HBM read of x, one HBM write of o; no
    # intermediate y round-trip through HBM.
    x = x_ref[...]
    o_ref[...] = (fn(x) + x).astype(o_ref.dtype)


# ---------------------------------------------------------------------------
# Tiling / budget helpers
# ---------------------------------------------------------------------------
def _tpu_budgets():
    """(per-array per-block byte target, scoped VMEM limit) — generation aware."""
    vmem_limit = 64 * 1024 * 1024  # fine on v5e/v6e (128 MiB physical)
    try:
        cap = int(pltpu.get_tpu_info().vmem_capacity_bytes)
        # Never claim the whole physical VMEM (v7x has only 64 MiB per TC).
        vmem_limit = min(64 * 1024 * 1024, int(0.75 * cap))
    except Exception:
        pass
    # Worst case 3 arrays x 2 pipeline buffers per block, plus headroom.
    block_bytes = min(4 * 1024 * 1024, vmem_limit // 12)
    return block_bytes, vmem_limit


def _pick_lanes(total, last, max_lanes=16384):
    """Lane-dense factorization of a contiguous array with `total` elements."""
    if last >= 128 and last % 128 == 0:
        return last
    if total > 0 and total % 128 == 0:
        # Re-factor the flat array into k*128 lanes (reshape of contiguous data
        # is free); pick the largest factor under max_lanes.
        rest = total // 128
        best = 1
        for k in range(1, min(rest, max_lanes // 128) + 1):
            if rest % k == 0:
                best = k
        return 128 * best
    # Not factorable into k*128 lanes: keep natural layout (masked lane tail).
    return max(last, 1)


def _choose_blocks(rows, lanes, itemsize, block_bytes, sub_unit):
    """Full-lane blocks when possible (one contiguous DMA per block); otherwise
    split lanes at a 128 multiple. Rows tiled at the dtype-aware sublane unit."""
    if lanes <= 128 or sub_unit * lanes * itemsize <= block_bytes:
        tl = lanes
    else:
        tl = max((block_bytes // (sub_unit * itemsize)) // 128 * 128, 128)
    max_tr = max(block_bytes // (tl * itemsize), sub_unit)
    if rows <= max_tr:
        tr = rows  # full extent is always a legal block shape
    else:
        tr = max((max_tr // sub_unit) * sub_unit, sub_unit)
    return tr, tl


def _residual_pallas_2d(kernel_body, operands, out_dtype, *,
                        input_output_aliases=None, block_bytes=None):
    R, L = operands[0].shape
    auto_block, vmem_limit = _tpu_budgets()
    if block_bytes is None:
        block_bytes = auto_block

    itemsizes = [o.dtype.itemsize for o in operands] + [np.dtype(out_dtype).itemsize]
    max_item, min_item = max(itemsizes), min(itemsizes)
    sub_unit = 8 * max(1, 4 // min_item)  # 8 f32 / 16 bf16 / 32 int8-fp8

    tr, tl = _choose_blocks(R, L, max_item, block_bytes, sub_unit)
    gr, gl = pl.cdiv(R, tr), pl.cdiv(L, tl)

    if gl == 1:
        grid = (gr,)
        index_map = lambda i: (i, 0)
    elif gr >= gl:
        grid = (gr, gl)
        index_map = lambda i, j: (i, j)
    else:
        # Larger axis first so v7x megacore sharding always has work on both TCs.
        grid = (gl, gr)
        index_map = lambda j, i: (i, j)
    dims = ("parallel",) * len(grid)

    spec = pl.BlockSpec((tr, tl), index_map)
    out_bytes = R * L * np.dtype(out_dtype).itemsize
    in_bytes = sum(int(o.size) * o.dtype.itemsize for o in operands)

    return pl.pallas_call(
        kernel_body,
        out_shape=jax.ShapeDtypeStruct((R, L), out_dtype),
        grid_spec=pltpu.PrefetchScalarGridSpec(
            num_scalar_prefetch=0,
            grid=grid,
            in_specs=[spec] * len(operands),
            out_specs=spec,
        ),
        input_output_aliases=dict(input_output_aliases or {}),
        compiler_params=pltpu.CompilerParams(
            dimension_semantics=dims,
            vmem_limit_bytes=vmem_limit,
        ),
        cost_estimate=pl.CostEstimate(
            flops=R * L,
            transcendentals=0,
            bytes_accessed=out_bytes + in_bytes,
        ),
    )(*operands)


# ---------------------------------------------------------------------------
# Public ops
# ---------------------------------------------------------------------------
def residual_add(y, x, *, block_bytes=None):
    """`y + x` as a Pallas TPU kernel for arbitrary matching shapes."""
    assert y.shape == x.shape, (y.shape, x.shape)
    out_dtype = jnp.result_type(y.dtype, x.dtype)
    total = int(x.size)
    if total == 0 or total * max(y.dtype.itemsize, x.dtype.itemsize) < _TINY_BYTES:
        return (y + x).astype(out_dtype)

    shape = x.shape
    last = shape[-1] if shape else 1
    lanes = _pick_lanes(total, last)
    rows = total // lanes
    y2 = y.reshape(rows, lanes)
    x2 = x.reshape(rows, lanes)

    # y is dead after the add -> let XLA reuse its buffer for the output.
    aliases = {0: 0} if y.dtype == out_dtype else {}
    out2 = _residual_pallas_2d(_add_kernel, (y2, x2), out_dtype,
                               input_output_aliases=aliases,
                               block_bytes=block_bytes)
    return out2.reshape(shape)


def residual_apply_fused(fn, x, *, block_bytes=None):
    """`fn(x) + x` with fn traced inside the Pallas kernel (fn must be
    elementwise / shape-preserving). Returns None if fn does not qualify."""
    shape = x.shape
    total = int(x.size)
    last = shape[-1] if shape else 1
    lanes = _pick_lanes(total, last)
    rows = total // lanes if lanes else 1

    # Trace-time sanity check on the flattened 2-D view.
    try:
        blk = jax.eval_shape(fn, jax.ShapeDtypeStruct((rows, lanes), x.dtype))
    except Exception:
        return None
    if blk.shape != (rows, lanes):
        return None
    out_dtype = jnp.result_type(blk.dtype, x.dtype)

    if total == 0 or total * max(x.dtype.itemsize, np.dtype(out_dtype).itemsize) < _TINY_BYTES:
        return (fn(x) + x).astype(out_dtype)

    x2 = x.reshape(rows, lanes)
    out2 = _residual_pallas_2d(functools.partial(_fused_kernel, fn), (x2,),
                               out_dtype, block_bytes=block_bytes)
    return out2.reshape(shape)


class Residual:
    """JAX/Pallas port of the PyTorch `Residual` module: fn(x, ...) + x.

    Pass elementwise=True when fn is a pure elementwise map (tanh, scale, bias,
    gating): it is then fused into the kernel, cutting HBM traffic ~40%.
    """

    def __init__(self, fn, elementwise=False):
        self.fn = fn
        self.elementwise = elementwise

    def __call__(self, x, *args, **kwargs):
        if self.elementwise and not args and not kwargs:
            out = residual_apply_fused(self.fn, x)
            if out is not None:
                return out
        # TODO(synk): non-elementwise wrapped fns (the norm/conv blocks of
        # modules1D_cls_free) run as plain JAX/XLA; only the residual add is a
        # Pallas kernel (with fn's output buffer aliased onto the kernel output).
        return residual_add(self.fn(x, *args, **kwargs), x)


# ---------------------------------------------------------------------------
# Example wrapped fn (plain JAX): channel LayerNorm over dim=1 of (B, C, L),
# i.e. the kind of block `Residual` wraps in the original file.
# ---------------------------------------------------------------------------
def _channel_layernorm(x, g, eps=1e-5):
    mean = jnp.mean(x, axis=1, keepdims=True)
    var = jnp.mean((x - mean) ** 2, axis=1, keepdims=True)
    return (x - mean) * jax.lax.rsqrt(var + eps) * g


if __name__ == "__main__":
    key = jax.random.PRNGKey(0)
    k1, k2, k3, k4, k5 = jax.random.split(key, 5)

    # 1) small (B, C, L) shape from the 1D modules; fn = channel LayerNorm
    #    (non-elementwise; tiny input -> XLA fallback for the add).
    B, C, L = 2, 4, 16
    x = jax.random.normal(k1, (B, C, L), dtype=jnp.float32)
    g = jnp.full((1, C, 1), 1.5, dtype=jnp.float32)
    fn = lambda t: _channel_layernorm(t, g)
    out = jax.block_until_ready(Residual(fn)(x))
    assert out.shape == x.shape
    assert jnp.allclose(out, fn(x) + x, atol=1e-5, rtol=1e-5)

    # 2) elementwise fn fused into the Pallas kernel (single x read / o write).
    xa = jax.random.normal(k2, (4, 8, 4096), dtype=jnp.float32)
    outa = jax.block_until_ready(Residual(jnp.tanh, elementwise=True)(xa))
    assert jnp.allclose(outa, jnp.tanh(xa) + xa, atol=1e-5, rtol=1e-5)

    # 3) non-elementwise fn at moderate size -> two-operand Pallas add kernel.
    xb = jax.random.normal(k3, (4, 8, 2176), dtype=jnp.float32)
    gb = jnp.ones((1, 8, 1), dtype=jnp.float32)
    fnb = lambda t: _channel_layernorm(t, gb)
    outb = jax.block_until_ready(Residual(fnb)(xb))
    assert jnp.allclose(outb, fnb(xb) + xb, atol=1e-5, rtol=1e-5)

    # 4) mixed dtypes: bf16 x, f32 fn output; cast happens inside the kernel.
    xc = jax.random.normal(k4, (4, 16, 1024), dtype=jnp.bfloat16)
    fnc = lambda t: t.astype(jnp.float32) * 0.5
    outc = jax.block_until_ready(Residual(fnc)(xc))
    assert outc.dtype == jnp.float32
    assert jnp.allclose(outc, fnc(xc) + xc.astype(jnp.float32), atol=1e-5, rtol=1e-5)

    # 5) last dim not a multiple of 128 -> lane-dense re-factorization path.
    xd = jax.random.normal(k5, (8, 32, 96), dtype=jnp.float32)
    outd = jax.block_until_ready(Residual(jnp.tanh, elementwise=True)(xd))
    assert jnp.allclose(outd, jnp.tanh(xd) + xd, atol=1e-5, rtol=1e-5)

    # 6) force a multi-block 2-D grid with masked lane-tail blocks.
    xe = jax.random.normal(jax.random.PRNGKey(6), (8, 8, 2176), dtype=jnp.float32)
    ye = 0.25 * xe
    oute = jax.block_until_ready(residual_add(ye, xe, block_bytes=64 * 1024))
    assert jnp.allclose(oute, 1.25 * xe, atol=1e-6, rtol=1e-6)

    print("KERNEL_OK")
</pallas_src>

<mosaic_0001>
module attributes {stable_mosaic.version = 11 : i64} {
  func.func @_fused_kernel(%arg0: i32, %arg1: memref<32x4096xf32, #tpu.memory_space<vmem>>, %arg2: memref<32x4096xf32, #tpu.memory_space<vmem>>) attributes {dimension_semantics = [#tpu.dimension_semantics<parallel>], iteration_bounds = array<i64: 1>, scalar_prefetch = 0 : i64, scratch_operands = 0 : i64, tpu.core_type = #tpu.core_type<tc>, window_params = [{transform_indices = @transform_0, window_bounds = array<i64: 32, 4096>}, {transform_indices = @transform_1, window_bounds = array<i64: 32, 4096>}]} {
    %c0 = arith.constant 0 : index
    %c0_0 = arith.constant 0 : index
    %0 = vector.load %arg1[%c0, %c0_0] : memref<32x4096xf32, #tpu.memory_space<vmem>>, vector<32x4096xf32>
    %1 = math.tanh %0 : vector<32x4096xf32>
    %2 = arith.addf %1, %0 : vector<32x4096xf32>
    %c0_1 = arith.constant 0 : index
    %c0_2 = arith.constant 0 : index
    %3 = vector.load %arg2[%c0_1, %c0_2] : memref<32x4096xf32, #tpu.memory_space<vmem>>, vector<32x4096xf32>
    tpu.vector_store %arg2[%c0_1, %c0_2], %2 {strides = array<i32>} : memref<32x4096xf32, #tpu.memory_space<vmem>>, vector<32x4096xf32>,
    return
  }
  func.func @transform_0(%arg0: i32) -> (i32, i32) {
    %c0_i32 = arith.constant 0 : i32
    %c0_i32_0 = arith.constant 0 : i32
    return %arg0, %c0_i32 : i32, i32
  }
  func.func @transform_1(%arg0: i32) -> (i32, i32) {
    %c0_i32 = arith.constant 0 : i32
    %c0_i32_0 = arith.constant 0 : i32
    return %arg0, %c0_i32 : i32, i32
  }
}

</mosaic_0001>

<llo_original>
// kernel: tpu_custom_call.1
$region0: #{tpu_custom_call.1}
  #allocation0 [shape = 'u32[]', space=smem, size = 0x4, offset = 0x4, fixed_abs, tag = 'smem constant byte address 0x4 - core index']
  #allocation1 [shape = 'u32[144,128]{1,0:T(1,128)}', space=vmem, size = 0x12000, scoped, tag = 'internal scratch']
  %s0 = inlined_call_operand.hbm [shape: f32[32,4096], index: 0, kind: input, shape index: {}]
  %s1 = inlined_call_operand.hbm [shape: f32[32,4096], index: 1, kind: output, shape index: {}]
  %s2 = sld [smem:[#allocation0]]
  $region18: #{tpu_custom_call.1} parent=0
    _
  %s4 = ssub.s32 1, %s2
  %s5 = scalar_select 0, %s4, %s2
  $region1: #{tpu_custom_call.1} parent=0
    #allocation2 [shape = 'u8[524288]{0}', space=vmem, size = 0x80000, scoped, tag = 'input window, operand 0, single buffered']
    #allocation3 [shape = 's32[1]{0}', space=sflag, size = 0x4, scoped, tag = 'scoped memory for tpu_custom_call.1']
    #allocation4 [shape = 's32[1]{0}', space=sflag, size = 0x4, scoped, tag = 'scoped memory for tpu_custom_call.1']
    #allocation5 [shape = 'u8[524288]{0}', space=vmem, size = 0x80000, scoped, tag = 'output window, operand 0, single buffered']
    %6 = vsyncpa [#allocation3], 0
    %7 = vsyncpa [#allocation4], 0
    // Predicated region
    $region2: #{tpu_custom_call.1} parent=1 // pred_check
      _
    $region3: #{tpu_custom_call.1} parent=1 // pred_check_branch
      %9 = sbr.rel (0) target = $region5
    $region4: #{tpu_custom_call.1} parent=1 // pred_region
      %s11 = ssub.s32 16384, 16384
      %12 = vsyncadd [#allocation3], %s11
      %s13 = sshll.u32 [#allocation2], 4
      %s14 = int_to_ptr.vmem [resolvable:$true] %s13
      %19 = dma.hbm_to_vmem [thread:$0]  %s0, 16384, %s14, [#allocation3], 4096, 4096, 256
    $region5: #{tpu_custom_call.1} parent=1 // pred_fallthru
      _
    // Predicated region
    $region6: #{tpu_custom_call.1} parent=1 // pred_check
      _
    $region7: #{tpu_custom_call.1} parent=1 // pred_check_branch
      %21 = sbr.rel (0) target = $region9
    $region8: #{tpu_custom_call.1} parent=1 // pred_region
      %22 = dma.done [#allocation3], 16384
    $region9: #{tpu_custom_call.1} parent=1 // pred_fallthru
      _
    %v23 = vld [vmem:[#allocation2] sm:$0xff]
    %v24 = vld [vmem:[#allocation2 + $0x8] sm:$0xff]
    %v25 = vld [vmem:[#allocation2 + $0x10] sm:$0xff]
    %v26 = vld [vmem:[#allocation2 + $0x18] sm:$0xff]
    %v27 = vld [vmem:[#allocation2 + $0x20] sm:$0xff]
    %v28 = vld [vmem:[#allocation2 + $0x28] sm:$0xff]
    %v29 = vld [vmem:[#allocation2 + $0x30] sm:$0xff]
    %v30 = vld [vmem:[#allocation2 + $0x38] sm:$0xff]
    %v31 = vld [vmem:[#allocation2 + $0x40] sm:$0xff]
    %v32 = vld [vmem:[#allocation2 + $0x48] sm:$0xff]
    %v33 = vld [vmem:[#allocation2 + $0x50] sm:$0xff]
    %v34 = vld [vmem:[#allocation2 + $0x58] sm:$0xff]
    %v35 = vld [vmem:[#allocation2 + $0x60] sm:$0xff]
    %v36 = vld [vmem:[#allocation2 + $0x68] sm:$0xff]
    %v37 = vld [vmem:[#allocation2 + $0x70] sm:$0xff]
    %v38 = vld [vmem:[#allocation2 + $0x78] sm:$0xff]
    %v39 = vld [vmem:[#allocation2 + $0x80] sm:$0xff]
    %v40 = vld [vmem:[#allocation2 + $0x88] sm:$0xff]
    %v41 = vld [vmem:[#allocation2 + $0x90] sm:$0xff]
    %v42 = vld [vmem:[#allocation2 + $0x98] sm:$0xff]
    %v43 = vld [vmem:[#allocation2 + $0xa0] sm:$0xff]
    %v44 = vld [vmem:[#allocation2 + $0xa8] sm:$0xff]
    %v45 = vld [vmem:[#allocation2 + $0xb0] sm:$0xff]
    %v46 = vld [vmem:[#allocation2 + $0xb8] sm:$0xff]
    %v47 = vld [vmem:[#allocation2 + $0xc0] sm:$0xff]
    %v48 = vld [vmem:[#allocation2 + $0xc8] sm:$0xff]
    %v49 = vld [vmem:[#allocation2 + $0xd0] sm:$0xff]
    %v50 = vld [vmem:[#allocation2 + $0xd8] sm:$0xff]
    %v51 = vld [vmem:[#allocation2 + $0xe0] sm:$0xff]
    %v52 = vld [vmem:[#allocation2 + $0xe8] sm:$0xff]
    %v53 = vld [vmem:[#allocation2 + $0xf0] sm:$0xff]
    %v54 = vld [vmem:[#allocation2 + $0xf8] sm:$0xff]
    %v55 = vld [vmem:[#allocation2 + $0x100] sm:$0xff]
    %v56 = vld [vmem:[#allocation2 + $0x108] sm:$0xff]
    %v57 = vld [vmem:[#allocation2 + $0x110] sm:$0xff]
    %v58 = vld [vmem:[#allocation2 + $0x118] sm:$0xff]
    %v59 = vld [vmem:[#allocation2 + $0x120] sm:$0xff]
    %v60 = vld [vmem:[#allocation2 + $0x128] sm:$0xff]
    %v61 = vld [vmem:[#allocation2 + $0x130] sm:$0xff]
    %v62 = vld [vmem:[#allocation2 + $0x138] sm:$0xff]
    %v63 = vld [vmem:[#allocation2 + $0x140] sm:$0xff]
    %v64 = vld [vmem:[#allocation2 + $0x148] sm:$0xff]
    %v65 = vld [vmem:[#allocation2 + $0x150] sm:$0xff]
    %v66 = vld [vmem:[#allocation2 + $0x158] sm:$0xff]
    %v67 = vld [vmem:[#allocation2 + $0x160] sm:$0xff]
    %v68 = vld [vmem:[#allocation2 + $0x168] sm:$0xff]
    %v69 = vld [vmem:[#allocation2 + $0x170] sm:$0xff]
    %v70 = vld [vmem:[#allocation2 + $0x178] sm:$0xff]
    %v71 = vld [vmem:[#allocation2 + $0x180] sm:$0xff]
    %v72 = vld [vmem:[#allocation2 + $0x188] sm:$0xff]
    %v73 = vld [vmem:[#allocation2 + $0x190] sm:$0xff]
    %v74 = vld [vmem:[#allocation2 + $0x198] sm:$0xff]
    %v75 = vld [vmem:[#allocation2 + $0x1a0] sm:$0xff]
    %v76 = vld [vmem:[#allocation2 + $0x1a8] sm:$0xff]
    %v77 = vld [vmem:[#allocation2 + $0x1b0] sm:$0xff]
    %v78 = vld [vmem:[#allocation2 + $0x1b8] sm:$0xff]
    %v79 = vld [vmem:[#allocation2 + $0x1c0] sm:$0xff]
    %v80 = vld [vmem:[#allocation2 + $0x1c8] sm:$0xff]
    %v81 = vld [vmem:[#allocation2 + $0x1d0] sm:$0xff]
    %v82 = vld [vmem:[#allocation2 + $0x1d8] sm:$0xff]
    %v83 = vld [vmem:[#allocation2 + $0x1e0] sm:$0xff]
    %v84 = vld [vmem:[#allocation2 + $0x1e8] sm:$0xff]
    %v85 = vld [vmem:[#allocation2 + $0x1f0] sm:$0xff]
    %v86 = vld [vmem:[#allocation2 + $0x1f8] sm:$0xff]
    %v87 = vld [vmem:[#allocation2 + $0x200] sm:$0xff]
    %v88 = vld [vmem:[#allocation2 + $0x208] sm:$0xff]
    %v89 = vld [vmem:[#allocation2 + $0x210] sm:$0xff]
    %v90 = vld [vmem:[#allocation2 + $0x218] sm:$0xff]
    %v91 = vld [vmem:[#allocation2 + $0x220] sm:$0xff]
    %v92 = vld [vmem:[#allocation2 + $0x228] sm:$0xff]
    %v93 = vld [vmem:[#allocation2 + $0x230] sm:$0xff]
    %v94 = vld [vmem:[#allocation2 + $0x238] sm:$0xff]
    %v95 = vld [vmem:[#allocation2 + $0x240] sm:$0xff]
    %v96 = vld [vmem:[#allocation2 + $0x248] sm:$0xff]
    %v97 = vld [vmem:[#allocation2 + $0x250] sm:$0xff]
    %v98 = vld [vmem:[#allocation2 + $0x258] sm:$0xff]
    %v99 = vld [vmem:[#allocation2 + $0x260] sm:$0xff]
    %v100 = vld [vmem:[#allocation2 + $0x268] sm:$0xff]
    %v101 = vld [vmem:[#allocation2 + $0x270] sm:$0xff]
    %v102 = vld [vmem:[#allocation2 + $0x278] sm:$0xff]
    %v103 = vld [vmem:[#allocation2 + $0x280] sm:$0xff]
    %v104 = vld [vmem:[#allocation2 + $0x288] sm:$0xff]
    %v105 = vld [vmem:[#allocation2 + $0x290] sm:$0xff]
    %v106 = vld [vmem:[#allocation2 + $0x298] sm:$0xff]
    %v107 = vld [vmem:[#allocation2 + $0x2a0] sm:$0xff]
    %v108 = vld [vmem:[#allocation2 + $0x2a8] sm:$0xff]
    %v109 = vld [vmem:[#allocation2 + $0x2b0] sm:$0xff]
    %v110 = vld [vmem:[#allocation2 + $0x2b8] sm:$0xff]
    %v111 = vld [vmem:[#allocation2 + $0x2c0] sm:$0xff]
    %v112 = vld [vmem:[#allocation2 + $0x2c8] sm:$0xff]
    %v113 = vld [vmem:[#allocation2 + $0x2d0] sm:$0xff]
    %v114 = vld [vmem:[#allocation2 + $0x2d8] sm:$0xff]
    %v115 = vld [vmem:[#allocation2 + $0x2e0] sm:$0xff]
    %v116 = vld [vmem:[#allocation2 + $0x2e8] sm:$0xff]
    %v117 = vld [vmem:[#allocation2 + $0x2f0] sm:$0xff]
    %v118 = vld [vmem:[#allocation2 + $0x2f8] sm:$0xff]
    %v119 = vld [vmem:[#allocation2 + $0x300] sm:$0xff]
    %v120 = vld [vmem:[#allocation2 + $0x308] sm:$0xff]
    %v121 = vld [vmem:[#allocation2 + $0x310] sm:$0xff]
    %v122 = vld [vmem:[#allocation2 + $0x318] sm:$0xff]
    %v123 = vld [vmem:[#allocation2 + $0x320] sm:$0xff]
    %v124 = vld [vmem:[#allocation2 + $0x328] sm:$0xff]
    %v125 = vld [vmem:[#allocation2 + $0x330] sm:$0xff]
    %v126 = vld [vmem:[#allocation2 + $0x338] sm:$0xff]
    %v127 = vld [vmem:[#allocation2 + $0x340] sm:$0xff]
    %v128 = vld [vmem:[#allocation2 + $0x348] sm:$0xff]
    %v129 = vld [vmem:[#allocation2 + $0x350] sm:$0xff]
    %v130 = vld [vmem:[#allocation2 + $0x358] sm:$0xff]
    %v131 = vld [vmem:[#allocation2 + $0x360] sm:$0xff]
    %v132 = vld [vmem:[#allocation2 + $0x368] sm:$0xff]
    %v133 = vld [vmem:[#allocation2 + $0x370] sm:$0xff]
    %v134 = vld [vmem:[#allocation2 + $0x378] sm:$0xff]
    %v135 = vld [vmem:[#allocation2 + $0x380] sm:$0xff]
    %v136 = vld [vmem:[#allocation2 + $0x388] sm:$0xff]
    %v137 = vld [vmem:[#allocation2 + $0x390] sm:$0xff]
    %v138 = vld [vmem:[#allocation2 + $0x398] sm:$0xff]
    %v139 = vld [vmem:[#allocation2 + $0x3a0] sm:$0xff]
    %v140 = vld [vmem:[#allocation2 + $0x3a8] sm:$0xff]
    %v141 = vld [vmem:[#allocation2 + $0x3b0] sm:$0xff]
    %v142 = vld [vmem:[#allocation2 + $0x3b8] sm:$0xff]
    %v143 = vld [vmem:[#allocation2 + $0x3c0] sm:$0xff]
    %v144 = vld [vmem:[#allocation2 + $0x3c8] sm:$0xff]
    %v145 = vld [vmem:[#allocation2 + $0x3d0] sm:$0xff]
    %v146 = vld [vmem:[#allocation2 + $0x3d8] sm:$0xff]
    %v147 = vld [vmem:[#allocation2 + $0x3e0] sm:$0xff]
    %v148 = vld [vmem:[#allocation2 + $0x3e8] sm:$0xff]
    %v149 = vld [vmem:[#allocation2 + $0x3f0] sm:$0xff]
    %v150 = vld [vmem:[#allocation2 + $0x3f8] sm:$0xff]
    %v151 = vtanh.pop %v23
    %v152 = vtanh.pop %v24
    %v153 = vtanh.pop %v25
    %v154 = vtanh.pop %v26
    %v155 = vtanh.pop %v27
    %v156 = vtanh.pop %v28
    %v157 = vtanh.pop %v29
    %v158 = vtanh.pop %v30
    %v159 = vtanh.pop %v31
    %v160 = vtanh.pop %v32
    %v161 = vtanh.pop %v33
    %v162 = vtanh.pop %v34
    %v163 = vtanh.pop %v35
    %v164 = vtanh.pop %v36
    %v165 = vtanh.pop %v37
    %v166 = vtanh.pop %v38
    %v167 = vtanh.pop %v39
    %v168 = vtanh.pop %v40
    %v169 = vtanh.pop %v41
    %v170 = vtanh.pop %v42
    %v171 = vtanh.pop %v43
    %v172 = vtanh.pop %v44
    %v173 = vtanh.pop %v45
    %v174 = vtanh.pop %v46
    %v175 = vtanh.pop %v47
    %v176 = vtanh.pop %v48
    %v177 = vtanh.pop %v49
    %v178 = vtanh.pop %v50
    %v179 = vtanh.pop %v51
    %v180 = vtanh.pop %v52
    %v181 = vtanh.pop %v53
    %v182 = vtanh.pop %v54
    %v183 = vtanh.pop %v55
    %v184 = vtanh.pop %v56
    %v185 = vtanh.pop %v57
    %v186 = vtanh.pop %v58
    %v187 = vtanh.pop %v59
    %v188 = vtanh.pop %v60
    %v189 = vtanh.pop %v61
    %v190 = vtanh.pop %v62
    %v191 = vtanh.pop %v63
    %v192 = vtanh.pop %v64
    %v193 = vtanh.pop %v65
    %v194 = vtanh.pop %v66
    %v195 = vtanh.pop %v67
    %v196 = vtanh.pop %v68
    %v197 = vtanh.pop %v69
    %v198 = vtanh.pop %v70
    %v199 = vtanh.pop %v71
    %v200 = vtanh.pop %v72
    %v201 = vtanh.pop %v73
    %v202 = vtanh.pop %v74
    %v203 = vtanh.pop %v75
    %v204 = vtanh.pop %v76
    %v205 = vtanh.pop %v77
    %v206 = vtanh.pop %v78
    %v207 = vtanh.pop %v79
    %v208 = vtanh.pop %v80
    %v209 = vtanh.pop %v81
    %v210 = vtanh.pop %v82
    %v211 = vtanh.pop %v83
    %v212 = vtanh.pop %v84
    %v213 = vtanh.pop %v85
    %v214 = vtanh.pop %v86
    %v215 = vtanh.pop %v87
    %v216 = vtanh.pop %v88
    %v217 = vtanh.pop %v89
    %v218 = vtanh.pop %v90
    %v219 = vtanh.pop %v91
    %v220 = vtanh.pop %v92
    %v221 = vtanh.pop %v93
    %v222 = vtanh.pop %v94
    %v223 = vtanh.pop %v95
    %v224 = vtanh.pop %v96
    %v225 = vtanh.pop %v97
    %v226 = vtanh.pop %v98
    %v227 = vtanh.pop %v99
    %v228 = vtanh.pop %v100
    %v229 = vtanh.pop %v101
    %v230 = vtanh.pop %v102
    %v231 = vtanh.pop %v103
    %v232 = vtanh.pop %v104
    %v233 = vtanh.pop %v105
    %v234 = vtanh.pop %v106
    %v235 = vtanh.pop %v107
    %v236 = vtanh.pop %v108
    %v237 = vtanh.pop %v109
    %v238 = vtanh.pop %v110
    %v239 = vtanh.pop %v111
    %v240 = vtanh.pop %v112
    %v241 = vtanh.pop %v113
    %v242 = vtanh.pop %v114
    %v243 = vtanh.pop %v115
    %v244 = vtanh.pop %v116
    %v245 = vtanh.pop %v117
    %v246 = vtanh.pop %v118
    %v247 = vtanh.pop %v119
    %v248 = vtanh.pop %v120
    %v249 = vtanh.pop %v121
    %v250 = vtanh.pop %v122
    %v251 = vtanh.pop %v123
    %v252 = vtanh.pop %v124
    %v253 = vtanh.pop %v125
    %v254 = vtanh.pop %v126
    %v255 = vtanh.pop %v127
    %v256 = vtanh.pop %v128
    %v257 = vtanh.pop %v129
    %v258 = vtanh.pop %v130
    %v259 = vtanh.pop %v131
    %v260 = vtanh.pop %v132
    %v261 = vtanh.pop %v133
    %v262 = vtanh.pop %v134
    %v263 = vtanh.pop %v135
    %v264 = vtanh.pop %v136
    %v265 = vtanh.pop %v137
    %v266 = vtanh.pop %v138
    %v267 = vtanh.pop %v139
    %v268 = vtanh.pop %v140
    %v269 = vtanh.pop %v141
    %v270 = vtanh.pop %v142
    %v271 = vtanh.pop %v143
    %v272 = vtanh.pop %v144
    %v273 = vtanh.pop %v145
    %v274 = vtanh.pop %v146
    %v275 = vtanh.pop %v147
    %v276 = vtanh.pop %v148
    %v277 = vtanh.pop %v149
    %v278 = vtanh.pop %v150
    %v279 = vadd.f32 %v151, %v23
    %v280 = vadd.f32 %v152, %v24
    %v281 = vadd.f32 %v153, %v25
    %v282 = vadd.f32 %v154, %v26
    %v283 = vadd.f32 %v155, %v27
    %v284 = vadd.f32 %v156, %v28
    %v285 = vadd.f32 %v157, %v29
    %v286 = vadd.f32 %v158, %v30
    %v287 = vadd.f32 %v159, %v31
    %v288 = vadd.f32 %v160, %v32
    %v289 = vadd.f32 %v161, %v33
    %v290 = vadd.f32 %v162, %v34
    %v291 = vadd.f32 %v163, %v35
    %v292 = vadd.f32 %v164, %v36
    %v293 = vadd.f32 %v165, %v37
    %v294 = vadd.f32 %v166, %v38
    %v295 = vadd.f32 %v167, %v39
    %v296 = vadd.f32 %v168, %v40
    %v297 = vadd.f32 %v169, %v41
    %v298 = vadd.f32 %v170, %v42
    %v299 = vadd.f32 %v171, %v43
    %v300 = vadd.f32 %v172, %v44
    %v301 = vadd.f32 %v173, %v45
    %v302 = vadd.f32 %v174, %v46
    %v303 = vadd.f32 %v175, %v47
    %v304 = vadd.f32 %v176, %v48
    %v305 = vadd.f32 %v177, %v49
    %v306 = vadd.f32 %v178, %v50
    %v307 = vadd.f32 %v179, %v51
    %v308 = vadd.f32 %v180, %v52
    %v309 = vadd.f32 %v181, %v53
    %v310 = vadd.f32 %v182, %v54
    %v311 = vadd.f32 %v183, %v55
    %v312 = vadd.f32 %v184, %v56
    %v313 = vadd.f32 %v185, %v57
    %v314 = vadd.f32 %v186, %v58
    %v315 = vadd.f32 %v187, %v59
    %v316 = vadd.f32 %v188, %v60
    %v317 = vadd.f32 %v189, %v61
    %v318 = vadd.f32 %v190, %v62
    %v319 = vadd.f32 %v191, %v63
    %v320 = vadd.f32 %v192, %v64
    %v321 = vadd.f32 %v193, %v65
    %v322 = vadd.f32 %v194, %v66
    %v323 = vadd.f32 %v195, %v67
    %v324 = vadd.f32 %v196, %v68
    %v325 = vadd.f32 %v197, %v69
    %v326 = vadd.f32 %v198, %v70
    %v327 = vadd.f32 %v199, %v71
    %v328 = vadd.f32 %v200, %v72
    %v329 = vadd.f32 %v201, %v73
    %v330 = vadd.f32 %v202, %v74
    %v331 = vadd.f32 %v203, %v75
    %v332 = vadd.f32 %v204, %v76
    %v333 = vadd.f32 %v205, %v77
    %v334 = vadd.f32 %v206, %v78
    %v335 = vadd.f32 %v207, %v79
    %v336 = vadd.f32 %v208, %v80
    %v337 = vadd.f32 %v209, %v81
    %v338 = vadd.f32 %v210, %v82
    %v339 = vadd.f32 %v211, %v83
    %v340 = vadd.f32 %v212, %v84
    %v341 = vadd.f32 %v213, %v85
    %v342 = vadd.f32 %v214, %v86
    %v343 = vadd.f32 %v215, %v87
    %v344 = vadd.f32 %v216, %v88
    %v345 = vadd.f32 %v217, %v89
    %v346 = vadd.f32 %v218, %v90
    %v347 = vadd.f32 %v219, %v91
    %v348 = vadd.f32 %v220, %v92
    %v349 = vadd.f32 %v221, %v93
    %v350 = vadd.f32 %v222, %v94
    %v351 = vadd.f32 %v223, %v95
    %v352 = vadd.f32 %v224, %v96
    %v353 = vadd.f32 %v225, %v97
    %v354 = vadd.f32 %v226, %v98
    %v355 = vadd.f32 %v227, %v99
    %v356 = vadd.f32 %v228, %v100
    %v357 = vadd.f32 %v229, %v101
    %v358 = vadd.f32 %v230, %v102
    %v359 = vadd.f32 %v231, %v103
    %v360 = vadd.f32 %v232, %v104
    %v361 = vadd.f32 %v233, %v105
    %v362 = vadd.f32 %v234, %v106
    %v363 = vadd.f32 %v235, %v107
    %v364 = vadd.f32 %v236, %v108
    %v365 = vadd.f32 %v237, %v109
    %v366 = vadd.f32 %v238, %v110
    %v367 = vadd.f32 %v239, %v111
    %v368 = vadd.f32 %v240, %v112
    %v369 = vadd.f32 %v241, %v113
    %v370 = vadd.f32 %v242, %v114
    %v371 = vadd.f32 %v243, %v115
    %v372 = vadd.f32 %v244, %v116
    %v373 = vadd.f32 %v245, %v117
    %v374 = vadd.f32 %v246, %v118
    %v375 = vadd.f32 %v247, %v119
    %v376 = vadd.f32 %v248, %v120
    %v377 = vadd.f32 %v249, %v121
    %v378 = vadd.f32 %v250, %v122
    %v379 = vadd.f32 %v251, %v123
    %v380 = vadd.f32 %v252, %v124
    %v381 = vadd.f32 %v253, %v125
    %v382 = vadd.f32 %v254, %v126
    %v383 = vadd.f32 %v255, %v127
    %v384 = vadd.f32 %v256, %v128
    %v385 = vadd.f32 %v257, %v129
    %v386 = vadd.f32 %v258, %v130
    %v387 = vadd.f32 %v259, %v131
    %v388 = vadd.f32 %v260, %v132
    %v389 = vadd.f32 %v261, %v133
    %v390 = vadd.f32 %v262, %v134
    %v391 = vadd.f32 %v263, %v135
    %v392 = vadd.f32 %v264, %v136
    %v393 = vadd.f32 %v265, %v137
    %v394 = vadd.f32 %v266, %v138
    %v395 = vadd.f32 %v267, %v139
    %v396 = vadd.f32 %v268, %v140
    %v397 = vadd.f32 %v269, %v141
    %v398 = vadd.f32 %v270, %v142
    %v399 = vadd.f32 %v271, %v143
    %v400 = vadd.f32 %v272, %v144
    %v401 = vadd.f32 %v273, %v145
    %v402 = vadd.f32 %v274, %v146
    %v403 = vadd.f32 %v275, %v147
    %v404 = vadd.f32 %v276, %v148
    %v405 = vadd.f32 %v277, %v149
    %v406 = vadd.f32 %v278, %v150
    %407 = vst [vmem:[#allocation5] sm:$0xff] %v279
    %408 = vst [vmem:[#allocation5 + $0x8] sm:$0xff] %v280
    %409 = vst [vmem:[#allocation5 + $0x10] sm:$0xff] %v281
    %410 = vst [vmem:[#allocation5 + $0x18] sm:$0xff] %v282
    %411 = vst [vmem:[#allocation5 + $0x20] sm:$0xff] %v283
    %412 = vst [vmem:[#allocation5 + $0x28] sm:$0xff] %v284
    %413 = vst [vmem:[#allocation5 + $0x30] sm:$0xff] %v285
    %414 = vst [vmem:[#allocation5 + $0x38] sm:$0xff] %v286
    %415 = vst [vmem:[#allocation5 + $0x40] sm:$0xff] %v287
    %416 = vst [vmem:[#allocation5 + $0x48] sm:$0xff] %v288
    %417 = vst [vmem:[#allocation5 + $0x50] sm:$0xff] %v289
    %418 = vst [vmem:[#allocation5 + $0x58] sm:$0xff] %v290
    %419 = vst [vmem:[#allocation5 + $0x60] sm:$0xff] %v291
    %420 = vst [vmem:[#allocation5 + $0x68] sm:$0xff] %v292
    %421 = vst [vmem:[#allocation5 + $0x70] sm:$0xff] %v293
    %422 = vst [vmem:[#allocation5 + $0x78] sm:$0xff] %v294
    %423 = vst [vmem:[#allocation5 + $0x80] sm:$0xff] %v295
    %424 = vst [vmem:[#allocation5 + $0x88] sm:$0xff] %v296
    %425 = vst [vmem:[#allocation5 + $0x90] sm:$0xff] %v297
    %426 = vst [vmem:[#allocation5 + $0x98] sm:$0xff] %v298
    %427 = vst [vmem:[#allocation5 + $0xa0] sm:$0xff] %v299
    %428 = vst [vmem:[#allocation5 + $0xa8] sm:$0xff] %v300
    %429 = vst [vmem:[#allocation5 + $0xb0] sm:$0xff] %v301
    %430 = vst [vmem:[#allocation5 + $0xb8] sm:$0xff] %v302
    %431 = vst [vmem:[#allocation5 + $0xc0] sm:$0xff] %v303
    %432 = vst [vmem:[#allocation5 + $0xc8] sm:$0xff] %v304
    %433 = vst [vmem:[#allocation5 + $0xd0] sm:$0xff] %v305
    %434 = vst [vmem:[#allocation5 + $0xd8] sm:$0xff] %v306
    %435 = vst [vmem:[#allocation5 + $0xe0] sm:$0xff] %v307
    %436 = vst [vmem:[#allocation5 + $0xe8] sm:$0xff] %v308
    %437 = vst [vmem:[#allocation5 + $0xf0] sm:$0xff] %v309
    %438 = vst [vmem:[#allocation5 + $0xf8] sm:$0xff] %v310
    %439 = vst [vmem:[#allocation5 + $0x100] sm:$0xff] %v311
    %440 = vst [vmem:[#allocation5 + $0x108] sm:$0xff] %v312
    %441 = vst [vmem:[#allocation5 + $0x110] sm:$0xff] %v313
    %442 = vst [vmem:[#allocation5 + $0x118] sm:$0xff] %v314
    %443 = vst [vmem:[#allocation5 + $0x120] sm:$0xff] %v315
    %444 = vst [vmem:[#allocation5 + $0x128] sm:$0xff] %v316
    %445 = vst [vmem:[#allocation5 + $0x130] sm:$0xff] %v317
    %446 = vst [vmem:[#allocation5 + $0x138] sm:$0xff] %v318
    %447 = vst [vmem:[#allocation5 + $0x140] sm:$0xff] %v319
    %448 = vst [vmem:[#allocation5 + $0x148] sm:$0xff] %v320
    %449 = vst [vmem:[#allocation5 + $0x150] sm:$0xff] %v321
    %450 = vst [vmem:[#allocation5 + $0x158] sm:$0xff] %v322
    %451 = vst [vmem:[#allocation5 + $0x160] sm:$0xff] %v323
    %452 = vst [vmem:[#allocation5 + $0x168] sm:$0xff] %v324
    %453 = vst [vmem:[#allocation5 + $0x170] sm:$0xff] %v325
    %454 = vst [vmem:[#allocation5 + $0x178] sm:$0xff] %v326
    %455 = vst [vmem:[#allocation5 + $0x180] sm:$0xff] %v327
    %456 = vst [vmem:[#allocation5 + $0x188] sm:$0xff] %v328
    %457 = vst [vmem:[#allocation5 + $0x190] sm:$0xff] %v329
    %458 = vst [vmem:[#allocation5 + $0x198] sm:$0xff] %v330
    %459 = vst [vmem:[#allocation5 + $0x1a0] sm:$0xff] %v331
    %460 = vst [vmem:[#allocation5 + $0x1a8] sm:$0xff] %v332
    %461 = vst [vmem:[#allocation5 + $0x1b0] sm:$0xff] %v333
    %462 = vst [vmem:[#allocation5 + $0x1b8] sm:$0xff] %v334
    %463 = vst [vmem:[#allocation5 + $0x1c0] sm:$0xff] %v335
    %464 = vst [vmem:[#allocation5 + $0x1c8] sm:$0xff] %v336
    %465 = vst [vmem:[#allocation5 + $0x1d0] sm:$0xff] %v337
    %466 = vst [vmem:[#allocation5 + $0x1d8] sm:$0xff] %v338
    %467 = vst [vmem:[#allocation5 + $0x1e0] sm:$0xff] %v339
    %468 = vst [vmem:[#allocation5 + $0x1e8] sm:$0xff] %v340
    %469 = vst [vmem:[#allocation5 + $0x1f0] sm:$0xff] %v341
    %470 = vst [vmem:[#allocation5 + $0x1f8] sm:$0xff] %v342
    %471 = vst [vmem:[#allocation5 + $0x200] sm:$0xff] %v343
    %472 = vst [vmem:[#allocation5 + $0x208] sm:$0xff] %v344
    %473 = vst [vmem:[#allocation5 + $0x210] sm:$0xff] %v345
    %474 = vst [vmem:[#allocation5 + $0x218] sm:$0xff] %v346
    %475 = vst [vmem:[#allocation5 + $0x220] sm:$0xff] %v347
    %476 = vst [vmem:[#allocation5 + $0x228] sm:$0xff] %v348
    %477 = vst [vmem:[#allocation5 + $0x230] sm:$0xff] %v349
    %478 = vst [vmem:[#allocation5 + $0x238] sm:$0xff] %v350
    %479 = vst [vmem:[#allocation5 + $0x240] sm:$0xff] %v351
    %480 = vst [vmem:[#allocation5 + $0x248] sm:$0xff] %v352
    %481 = vst [vmem:[#allocation5 + $0x250] sm:$0xff] %v353
    %482 = vst [vmem:[#allocation5 + $0x258] sm:$0xff] %v354
    %483 = vst [vmem:[#allocation5 + $0x260] sm:$0xff] %v355
    %484 = vst [vmem:[#allocation5 + $0x268] sm:$0xff] %v356
    %485 = vst [vmem:[#allocation5 + $0x270] sm:$0xff] %v357
    %486 = vst [vmem:[#allocation5 + $0x278] sm:$0xff] %v358
    %487 = vst [vmem:[#allocation5 + $0x280] sm:$0xff] %v359
    %488 = vst [vmem:[#allocation5 + $0x288] sm:$0xff] %v360
    %489 = vst [vmem:[#allocation5 + $0x290] sm:$0xff] %v361
    %490 = vst [vmem:[#allocation5 + $0x298] sm:$0xff] %v362
    %491 = vst [vmem:[#allocation5 + $0x2a0] sm:$0xff] %v363
    %492 = vst [vmem:[#allocation5 + $0x2a8] sm:$0xff] %v364
    %493 = vst [vmem:[#allocation5 + $0x2b0] sm:$0xff] %v365
    %494 = vst [vmem:[#allocation5 + $0x2b8] sm:$0xff] %v366
    %495 = vst [vmem:[#allocation5 + $0x2c0] sm:$0xff] %v367
    %496 = vst [vmem:[#allocation5 + $0x2c8] sm:$0xff] %v368
    %497 = vst [vmem:[#allocation5 + $0x2d0] sm:$0xff] %v369
    %498 = vst [vmem:[#allocation5 + $0x2d8] sm:$0xff] %v370
    %499 = vst [vmem:[#allocation5 + $0x2e0] sm:$0xff] %v371
    %500 = vst [vmem:[#allocation5 + $0x2e8] sm:$0xff] %v372
    %501 = vst [vmem:[#allocation5 + $0x2f0] sm:$0xff] %v373
    %502 = vst [vmem:[#allocation5 + $0x2f8] sm:$0xff] %v374
    %503 = vst [vmem:[#allocation5 + $0x300] sm:$0xff] %v375
    %504 = vst [vmem:[#allocation5 + $0x308] sm:$0xff] %v376
    %505 = vst [vmem:[#allocation5 + $0x310] sm:$0xff] %v377
    %506 = vst [vmem:[#allocation5 + $0x318] sm:$0xff] %v378
    %507 = vst [vmem:[#allocation5 + $0x320] sm:$0xff] %v379
    %508 = vst [vmem:[#allocation5 + $0x328] sm:$0xff] %v380
    %509 = vst [vmem:[#allocation5 + $0x330] sm:$0xff] %v381
    %510 = vst [vmem:[#allocation5 + $0x338] sm:$0xff] %v382
    %511 = vst [vmem:[#allocation5 + $0x340] sm:$0xff] %v383
    %512 = vst [vmem:[#allocation5 + $0x348] sm:$0xff] %v384
    %513 = vst [vmem:[#allocation5 + $0x350] sm:$0xff] %v385
    %514 = vst [vmem:[#allocation5 + $0x358] sm:$0xff] %v386
    %515 = vst [vmem:[#allocation5 + $0x360] sm:$0xff] %v387
    %516 = vst [vmem:[#allocation5 + $0x368] sm:$0xff] %v388
    %517 = vst [vmem:[#allocation5 + $0x370] sm:$0xff] %v389
    %518 = vst [vmem:[#allocation5 + $0x378] sm:$0xff] %v390
    %519 = vst [vmem:[#allocation5 + $0x380] sm:$0xff] %v391
    %520 = vst [vmem:[#allocation5 + $0x388] sm:$0xff] %v392
    %521 = vst [vmem:[#allocation5 + $0x390] sm:$0xff] %v393
    %522 = vst [vmem:[#allocation5 + $0x398] sm:$0xff] %v394
    %523 = vst [vmem:[#allocation5 + $0x3a0] sm:$0xff] %v395
    %524 = vst [vmem:[#allocation5 + $0x3a8] sm:$0xff] %v396
    %525 = vst [vmem:[#allocation5 + $0x3b0] sm:$0xff] %v397
    %526 = vst [vmem:[#allocation5 + $0x3b8] sm:$0xff] %v398
    %527 = vst [vmem:[#allocation5 + $0x3c0] sm:$0xff] %v399
    %528 = vst [vmem:[#allocation5 + $0x3c8] sm:$0xff] %v400
    %529 = vst [vmem:[#allocation5 + $0x3d0] sm:$0xff] %v401
    %530 = vst [vmem:[#allocation5 + $0x3d8] sm:$0xff] %v402
    %531 = vst [vmem:[#allocation5 + $0x3e0] sm:$0xff] %v403
    %532 = vst [vmem:[#allocation5 + $0x3e8] sm:$0xff] %v404
    %533 = vst [vmem:[#allocation5 + $0x3f0] sm:$0xff] %v405
    %534 = vst [vmem:[#allocation5 + $0x3f8] sm:$0xff] %v406
    // Predicated region
    $region10: #{tpu_custom_call.1} parent=1 // pred_check
      _
    $region11: #{tpu_custom_call.1} parent=1 // pred_check_branch
      %536 = sbr.rel (0) target = $region13
    $region12: #{tpu_custom_call.1} parent=1 // pred_region
      %s538 = ssub.s32 16384, 16384
      %539 = vsyncadd [#allocation4], %s538
      %s540 = sshll.u32 [#allocation5], 4
      %s541 = int_to_ptr.vmem [resolvable:$true] %s540
      %546 = dma.vmem_to_hbm [thread:$0]  %s541, 16384, %s1, [#allocation4], 4096, 4096, 256
    $region13: #{tpu_custom_call.1} parent=1 // pred_fallthru
      _
    // Predicated region
    $region14: #{tpu_custom_call.1} parent=1 // pred_check
      _
    $region15: #{tpu_custom_call.1} parent=1 // pred_check_branch
      %548 = sbr.rel (0) target = $region17
    $region16: #{tpu_custom_call.1} parent=1 // pred_region
      %549 = dma.done [#allocation4], 16384
    $region17: #{tpu_custom_call.1} parent=1 // pred_fallthru
      _
    %550 = vsyncpa [#allocation3], 1
    %551 = vsyncpa [#allocation4], 1

</llo_original>
